<compile_context>
chip_gen: v7x
topology: tpu7x:2x2x1
jax: 0.10.0
libtpu: 0.0.40
codegen_flags: <defaults>
</compile_context>

<pallas_src>
import functools

import jax
import jax.numpy as jnp
from jax.experimental import pallas as pl
from jax.experimental.pallas import tpu as pltpu

PART = 6
BN_EPS = 1e-5


def pcb_part_kernel(x_ref, wconv_ref, bconv_ref, wfc_ref, bfc_ref,
                    feat_ref, score_ref, *, inv_pool):
    # x_ref: (N, Hp, W, C) -- this part's adaptive-pool bin (bf16 in HBM).
    x = x_ref[...].astype(jnp.float32)

    # AdaptiveAvgPool2d((6, 1)): un-normalized sum here; the 1/(Hp*W) scale is
    # folded into wconv (for scores) and applied once for the feature output.
    pooled_sum = jnp.sum(x, axis=(1, 2))                           # (N, C) f32

    # features[i] = part[i].view(N, -1)   (dropout = identity in eval mode)
    feat_ref[...] = (pooled_sum * inv_pool).astype(feat_ref.dtype)

    # ClassBlock.add_block: 1x1 Conv (BN + pool scale pre-folded) -> ReLU
    h = jnp.dot(pooled_sum, wconv_ref[...],
                preferred_element_type=jnp.float32) + bconv_ref[...]  # (N, B)
    h = jnp.maximum(h, 0.0)

    # torch.squeeze -> ClassBlock.classifier: Linear(B -> K)
    s = jnp.dot(h, wfc_ref[...],
                preferred_element_type=jnp.float32) + bfc_ref[...]    # (N, K)
    score_ref[...] = s.astype(score_ref.dtype)


def pcb_train_forward(x_nhwc, params):
    """x_nhwc: (N, H, W, C) backbone output (bf16 recommended)."""
    N, H, W, C = x_nhwc.shape
    assert H % PART == 0, "H must be divisible by the number of parts (6)"
    Hp = H // PART
    B = params["wconv"].shape[-1]
    K = params["wfc"].shape[-1]
    inv_pool = 1.0 / float(Hp * W)

    # Fold BN (running stats) and the pooling scale into the 1x1 conv.
    scale = params["gamma"] * jax.lax.rsqrt(params["var"] + BN_EPS)   # (P,1,B)
    wconv_f = params["wconv"] * (scale * inv_pool)                    # (P,C,B)
    bconv_f = params["beta"] - params["mean"] * scale                 # (P,1,B)
    wfc = params["wfc"]                                               # (P,B,K)
    bfc = params["bfc"]                                               # (P,1,K)

    kernel = functools.partial(pcb_part_kernel, inv_pool=inv_pool)

    bytes_in = (x_nhwc.size * x_nhwc.dtype.itemsize
                + wconv_f.size * 4 + bconv_f.size * 4
                + wfc.size * 4 + bfc.size * 4)
    bytes_out = PART * N * (C * x_nhwc.dtype.itemsize + K * 4)
    cost = pl.CostEstimate(
        flops=2 * PART * N * (C * B + B * K),
        transcendentals=0,
        bytes_accessed=bytes_in + bytes_out,
    )

    grid_spec = pltpu.PrefetchScalarGridSpec(
        num_scalar_prefetch=0,
        grid=(PART,),
        in_specs=[
            # feature stripe: all of N/W/C, the i-th H-stripe of size Hp
            pl.BlockSpec((N, Hp, W, C), lambda i: (0, i, 0, 0)),
            # per-part folded conv weight / bias, fc weight / bias
            pl.BlockSpec((pl.Squeezed(), C, B), lambda i: (i, 0, 0)),
            pl.BlockSpec((pl.Squeezed(), 1, B), lambda i: (i, 0, 0)),
            pl.BlockSpec((pl.Squeezed(), B, K), lambda i: (i, 0, 0)),
            pl.BlockSpec((pl.Squeezed(), 1, K), lambda i: (i, 0, 0)),
        ],
        out_specs=[
            pl.BlockSpec((pl.Squeezed(), N, C), lambda i: (i, 0, 0)),  # features
            pl.BlockSpec((pl.Squeezed(), N, K), lambda i: (i, 0, 0)),  # scores
        ],
    )

    features, scores = pl.pallas_call(
        kernel,
        grid_spec=grid_spec,
        out_shape=(
            jax.ShapeDtypeStruct((PART, N, C), x_nhwc.dtype),   # features (bf16)
            jax.ShapeDtypeStruct((PART, N, K), jnp.float32),    # scores
        ),
        compiler_params=pltpu.CompilerParams(
            dimension_semantics=("parallel",),
            # Large stripe blocks at realistic shapes (C=2048) exceed the
            # default scoped VMEM on v5e (16 MiB) / v6e, v7x (32 MiB); 48 MiB
            # keeps double-buffering everywhere (< 64 MiB physical on v7x).
            vmem_limit_bytes=48 * 1024 * 1024,
        ),
        cost_estimate=cost,
    )(x_nhwc, wconv_f, bconv_f, wfc, bfc)
    return features, scores


def reference_forward(x_nhwc, params):
    """Pure-JAX reference of the same (eval-mode) forward semantics."""
    N, H, W, C = x_nhwc.shape
    Hp = H // PART
    xf = x_nhwc.astype(jnp.float32)
    pooled = xf.reshape(N, PART, Hp, W, C).mean(axis=(2, 3))      # (N, PART, C)
    feats, scores = [], []
    for i in range(PART):
        f = pooled[:, i, :]                                       # (N, C)
        h = f @ params["wconv"][i]                                # (N, B)
        inv_std = 1.0 / jnp.sqrt(params["var"][i, 0] + BN_EPS)
        h = (h - params["mean"][i, 0]) * params["gamma"][i, 0] * inv_std \
            + params["beta"][i, 0]
        h = jnp.maximum(h, 0.0)
        s = h @ params["wfc"][i] + params["bfc"][i, 0]            # (N, K)
        feats.append(f)
        scores.append(s)
    return jnp.stack(feats), jnp.stack(scores)


def init_params(key, C, B, K):
    k_conv, k_gamma, k_fc = jax.random.split(key, 3)
    # Conv2d 1x1: kaiming_normal_, mode='fan_out', relu -> std = sqrt(2 / fan_out)
    wconv = (jax.random.normal(k_conv, (PART, C, B), jnp.float32)
             * jnp.sqrt(2.0 / B))
    # BatchNorm2d (weights_init_kaiming): weight ~ N(1, 0.02) per the reid
    # convention, bias = 0; running stats mean=0, var=1.
    gamma = 1.0 + 0.02 * jax.random.normal(k_gamma, (PART, 1, B), jnp.float32)
    beta = jnp.zeros((PART, 1, B), jnp.float32)
    mean = jnp.zeros((PART, 1, B), jnp.float32)
    var = jnp.ones((PART, 1, B), jnp.float32)
    # Linear classifier: weight ~ N(0, 0.001), bias = 0 (stored pre-transposed).
    wfc = 0.001 * jax.random.normal(k_fc, (PART, B, K), jnp.float32)
    bfc = jnp.zeros((PART, 1, K), jnp.float32)
    return dict(wconv=wconv, gamma=gamma, beta=beta, mean=mean, var=var,
                wfc=wfc, bfc=bfc)


if __name__ == "__main__":
    # Small synthetic but lane/sublane-friendly shapes: batch N=8, backbone
    # channels C=128 (stand-in for 2048), spatial 12x8 (H divisible by 6
    # parts), bottleneck B=128 (stand-in for 256), num_classes K=128.
    N, C, H, W = 8, 128, 12, 8
    B, K = 128, 128

    key = jax.random.PRNGKey(0)
    k_x, k_p = jax.random.split(key)
    # Backbone output in NHWC, bf16 (halves the dominant HBM read).
    x = jax.random.normal(k_x, (N, H, W, C), jnp.float32).astype(jnp.bfloat16)
    params = init_params(k_p, C, B, K)

    features, scores = pcb_train_forward(x, params)
    features = jax.block_until_ready(features)
    scores = jax.block_until_ready(scores)

    ref_feat, ref_scores = reference_forward(x, params)
    assert features.shape == (PART, N, C)
    assert scores.shape == (PART, N, K)
    # features are emitted in bf16; compare at bf16-level tolerance.
    assert jnp.allclose(features.astype(jnp.float32), ref_feat,
                        atol=2e-2, rtol=2e-2)
    assert jnp.allclose(scores, ref_scores, atol=2e-3, rtol=2e-2)

    print("KERNEL_OK")
</pallas_src>

<mosaic_0001>
module attributes {stable_mosaic.version = 11 : i64} {
  func.func @pcb_part_kernel(%arg0: i32, %arg1: memref<8x2x8x128xbf16, #tpu.memory_space<vmem>>, %arg2: memref<1x128x128xf32, #tpu.memory_space<vmem>>, %arg3: memref<1x1x128xf32, #tpu.memory_space<vmem>>, %arg4: memref<1x128x128xf32, #tpu.memory_space<vmem>>, %arg5: memref<1x1x128xf32, #tpu.memory_space<vmem>>, %arg6: memref<1x8x128xbf16, #tpu.memory_space<vmem>>, %arg7: memref<1x8x128xf32, #tpu.memory_space<vmem>>) attributes {dimension_semantics = [#tpu.dimension_semantics<parallel>], iteration_bounds = array<i64: 6>, scalar_prefetch = 0 : i64, scratch_operands = 0 : i64, tpu.core_type = #tpu.core_type<tc>, window_params = [{transform_indices = @transform_0, window_bounds = array<i64: 8, 2, 8, 128>}, {transform_indices = @transform_1, window_bounds = array<i64: 1, 128, 128>}, {transform_indices = @transform_2, window_bounds = array<i64: 1, 1, 128>}, {transform_indices = @transform_3, window_bounds = array<i64: 1, 128, 128>}, {transform_indices = @transform_4, window_bounds = array<i64: 1, 1, 128>}, {transform_indices = @transform_5, window_bounds = array<i64: 1, 8, 128>}, {transform_indices = @transform_6, window_bounds = array<i64: 1, 8, 128>}]} {
    %c0 = arith.constant 0 : index
    %c0_0 = arith.constant 0 : index
    %c0_1 = arith.constant 0 : index
    %c0_2 = arith.constant 0 : index
    %0 = vector.load %arg1[%c0, %c0_0, %c0_1, %c0_2] : memref<8x2x8x128xbf16, #tpu.memory_space<vmem>>, vector<8x2x8x128xbf16>
    %1 = arith.extf %0 : vector<8x2x8x128xbf16> to vector<8x2x8x128xf32>
    %cst = arith.constant dense<0.000000e+00> : vector<8x128xf32>
    %2 = vector.multi_reduction <add>, %1, %cst [1, 2] : vector<8x2x8x128xf32> to vector<8x128xf32>
    %cst_3 = arith.constant 6.250000e-02 : f32
    %3 = vector.broadcast %cst_3 : f32 to vector<8x128xf32>
    %4 = arith.mulf %2, %3 : vector<8x128xf32>
    %5 = arith.truncf %4 : vector<8x128xf32> to vector<8x128xbf16>
    %c0_4 = arith.constant 0 : index
    %c0_5 = arith.constant 0 : index
    %c0_6 = arith.constant 0 : index
    %6 = vector.load %arg6[%c0_4, %c0_5, %c0_6] : memref<1x8x128xbf16, #tpu.memory_space<vmem>>, vector<1x8x128xbf16>
    %7 = vector.shape_cast %6 : vector<1x8x128xbf16> to vector<8x128xbf16>
    %8 = vector.shape_cast %5 : vector<8x128xbf16> to vector<1x8x128xbf16>
    tpu.vector_store %arg6[%c0_4, %c0_5, %c0_6], %8 {strides = array<i32>} : memref<1x8x128xbf16, #tpu.memory_space<vmem>>, vector<1x8x128xbf16>,
    %c0_7 = arith.constant 0 : index
    %c0_8 = arith.constant 0 : index
    %c0_9 = arith.constant 0 : index
    %9 = vector.load %arg2[%c0_7, %c0_8, %c0_9] : memref<1x128x128xf32, #tpu.memory_space<vmem>>, vector<1x128x128xf32>
    %10 = vector.shape_cast %9 : vector<1x128x128xf32> to vector<128x128xf32>
    %cst_10 = arith.constant dense<0.000000e+00> : vector<8x128xf32>
    %11 = tpu.matmul %2, %10, %cst_10 {dimension_numbers = #tpu.dot_dimension_numbers<[1], [0], [0], [1], [0, 0, 1, 1], [], []>} : vector<8x128xf32>, vector<128x128xf32>, vector<8x128xf32> -> vector<8x128xf32>
    %c0_11 = arith.constant 0 : index
    %c0_12 = arith.constant 0 : index
    %c0_13 = arith.constant 0 : index
    %12 = vector.load %arg3[%c0_11, %c0_12, %c0_13] : memref<1x1x128xf32, #tpu.memory_space<vmem>>, vector<1x1x128xf32>
    %13 = vector.shape_cast %12 : vector<1x1x128xf32> to vector<1x128xf32>
    %14 = vector.broadcast %13 : vector<1x128xf32> to vector<8x128xf32>
    %15 = arith.addf %11, %14 : vector<8x128xf32>
    %cst_14 = arith.constant 0.000000e+00 : f32
    %16 = vector.broadcast %cst_14 : f32 to vector<8x128xf32>
    %17 = arith.maximumf %15, %16 : vector<8x128xf32>
    %c0_15 = arith.constant 0 : index
    %c0_16 = arith.constant 0 : index
    %c0_17 = arith.constant 0 : index
    %18 = vector.load %arg4[%c0_15, %c0_16, %c0_17] : memref<1x128x128xf32, #tpu.memory_space<vmem>>, vector<1x128x128xf32>
    %19 = vector.shape_cast %18 : vector<1x128x128xf32> to vector<128x128xf32>
    %cst_18 = arith.constant dense<0.000000e+00> : vector<8x128xf32>
    %20 = tpu.matmul %17, %19, %cst_18 {dimension_numbers = #tpu.dot_dimension_numbers<[1], [0], [0], [1], [0, 0, 1, 1], [], []>} : vector<8x128xf32>, vector<128x128xf32>, vector<8x128xf32> -> vector<8x128xf32>
    %c0_19 = arith.constant 0 : index
    %c0_20 = arith.constant 0 : index
    %c0_21 = arith.constant 0 : index
    %21 = vector.load %arg5[%c0_19, %c0_20, %c0_21] : memref<1x1x128xf32, #tpu.memory_space<vmem>>, vector<1x1x128xf32>
    %22 = vector.shape_cast %21 : vector<1x1x128xf32> to vector<1x128xf32>
    %23 = vector.broadcast %22 : vector<1x128xf32> to vector<8x128xf32>
    %24 = arith.addf %20, %23 : vector<8x128xf32>
    %c0_22 = arith.constant 0 : index
    %c0_23 = arith.constant 0 : index
    %c0_24 = arith.constant 0 : index
    %25 = vector.load %arg7[%c0_22, %c0_23, %c0_24] : memref<1x8x128xf32, #tpu.memory_space<vmem>>, vector<1x8x128xf32>
    %26 = vector.shape_cast %25 : vector<1x8x128xf32> to vector<8x128xf32>
    %27 = vector.shape_cast %24 : vector<8x128xf32> to vector<1x8x128xf32>
    tpu.vector_store %arg7[%c0_22, %c0_23, %c0_24], %27 {strides = array<i32>} : memref<1x8x128xf32, #tpu.memory_space<vmem>>, vector<1x8x128xf32>,
    return
  }
  func.func @transform_0(%arg0: i32) -> (i32, i32, i32, i32) {
    %c0_i32 = arith.constant 0 : i32
    %c0_i32_0 = arith.constant 0 : i32
    %c0_i32_1 = arith.constant 0 : i32
    %c0_i32_2 = arith.constant 0 : i32
    return %c0_i32, %arg0, %c0_i32_0, %c0_i32_1 : i32, i32, i32, i32
  }
  func.func @transform_1(%arg0: i32) -> (i32, i32, i32) {
    %c0_i32 = arith.constant 0 : i32
    %c0_i32_0 = arith.constant 0 : i32
    %c0_i32_1 = arith.constant 0 : i32
    return %arg0, %c0_i32, %c0_i32_0 : i32, i32, i32
  }
  func.func @transform_2(%arg0: i32) -> (i32, i32, i32) {
    %c0_i32 = arith.constant 0 : i32
    %c0_i32_0 = arith.constant 0 : i32
    %c0_i32_1 = arith.constant 0 : i32
    return %arg0, %c0_i32, %c0_i32_0 : i32, i32, i32
  }
  func.func @transform_3(%arg0: i32) -> (i32, i32, i32) {
    %c0_i32 = arith.constant 0 : i32
    %c0_i32_0 = arith.constant 0 : i32
    %c0_i32_1 = arith.constant 0 : i32
    return %arg0, %c0_i32, %c0_i32_0 : i32, i32, i32
  }
  func.func @transform_4(%arg0: i32) -> (i32, i32, i32) {
    %c0_i32 = arith.constant 0 : i32
    %c0_i32_0 = arith.constant 0 : i32
    %c0_i32_1 = arith.constant 0 : i32
    return %arg0, %c0_i32, %c0_i32_0 : i32, i32, i32
  }
  func.func @transform_5(%arg0: i32) -> (i32, i32, i32) {
    %c0_i32 = arith.constant 0 : i32
    %c0_i32_0 = arith.constant 0 : i32
    %c0_i32_1 = arith.constant 0 : i32
    return %arg0, %c0_i32, %c0_i32_0 : i32, i32, i32
  }
  func.func @transform_6(%arg0: i32) -> (i32, i32, i32) {
    %c0_i32 = arith.constant 0 : i32
    %c0_i32_0 = arith.constant 0 : i32
    %c0_i32_1 = arith.constant 0 : i32
    return %arg0, %c0_i32, %c0_i32_0 : i32, i32, i32
  }
}

</mosaic_0001>

<llo_original>
// kernel: tpu_custom_call.1
$region0: #{tpu_custom_call.1}
  #allocation0 [shape = 'u32[]', space=smem, size = 0x4, offset = 0x4, fixed_abs, tag = 'smem constant byte address 0x4 - core index']
  #allocation1 [shape = 'u32[144,128]{1,0:T(1,128)}', space=vmem, size = 0x12000, scoped, tag = 'internal scratch']
  #allocation11 [shape = 's32[]', space=sflag, size = 0x4, offset = 0, fixed_abs, tag = 'sflag constant byte address 0x0 - dummy sync flag']
  %s0 = inlined_call_operand.hbm [shape: bf16[8,12,8,128], index: 0, kind: input, shape index: {}]
  %s1 = inlined_call_operand.hbm [shape: f32[6,128,128], index: 1, kind: input, shape index: {}]
  %s2 = inlined_call_operand.vmem [shape: f32[6,1,128], index: 2, kind: input, shape index: {}]
  %s3 = inlined_call_operand.hbm [shape: f32[6,128,128], index: 3, kind: input, shape index: {}]
  %s4 = inlined_call_operand.vmem [shape: f32[6,1,128], index: 4, kind: input, shape index: {}]
  %s5 = inlined_call_operand.hbm [shape: bf16[6,8,128], index: 5, kind: output, shape index: {0}]
  %s6 = inlined_call_operand.hbm [shape: f32[6,8,128], index: 6, kind: output, shape index: {1}]
  %7 = xla_tuple %s5, %s6
  %s8 = sld [smem:[#allocation0]]
  $region73: #{tpu_custom_call.1} parent=0
    _
  %s10 = ssub.s32 1, %s8
  %s11 = scalar_select 0, %s10, %s8
  $region1: #{tpu_custom_call.1} parent=0
    #allocation2 [shape = 'u8[65536]{0}', space=vmem, size = 0x10000, scoped, tag = 'input window, operand 0']
    #allocation3 [shape = 's32[2]{0}', space=sflag, size = 0x8, scoped, tag = 'scoped memory for tpu_custom_call.1']
    #allocation4 [shape = 's32[2]{0}', space=sflag, size = 0x8, scoped, tag = 'scoped memory for tpu_custom_call.1']
    #allocation5 [shape = 'u8[131072]{0}', space=vmem, size = 0x20000, scoped, tag = 'input window, operand 1']
    #allocation6 [shape = 's32[2]{0}', space=sflag, size = 0x8, scoped, tag = 'scoped memory for tpu_custom_call.1']
    #allocation7 [shape = 'u8[131072]{0}', space=vmem, size = 0x20000, scoped, tag = 'input window, operand 3']
    #allocation8 [shape = 'u8[4096]{0}', space=vmem, size = 0x1000, scoped, tag = 'output window, operand 0']
    #allocation9 [shape = 'u8[8192]{0}', space=vmem, size = 0x2000, scoped, tag = 'output window, operand 1']
    #allocation10 [shape = 's32[2]{0}', space=sflag, size = 0x8, scoped, tag = 'scoped memory for tpu_custom_call.1']
    %12 = vsyncpa [#allocation3], 0
    %s13 = scalar_lea.sflag [#allocation3], 1
    %14 = vsyncpa %s13, 0
    %15 = vsyncpa [#allocation6], 0
    %s16 = scalar_lea.sflag [#allocation6], 1
    %17 = vsyncpa %s16, 0
    %18 = vsyncpa [#allocation4], 0
    %s19 = scalar_lea.sflag [#allocation4], 1
    %20 = vsyncpa %s19, 0
    %21 = vsyncpa [#allocation10], 0
    %s22 = scalar_lea.sflag [#allocation10], 1
    %23 = vsyncpa %s22, 0
    loop: start=0, step=1, limit=8
    $region2: #{tpu_custom_call.1} parent=1 // loop_pre_header
      _
    $region3: #{tpu_custom_call.1} parent=1 // loop_header
      %s25 = sphi 0, %s29
      %p26 = scmp.ge.s32.totalorder %s25, 8
      %s35 = sphi 0, %s37
      %s38 = sphi 0, %s35
      %s39 = sphi 0, %s38
      %s55 = sphi 0, %s39
      %s61 = sphi 0, %s63
      %s64 = sphi 0, %s61
      %s65 = sphi 0, %s64
      %s81 = sphi 0, %s65
      %s87 = sphi 0, %s89
      %s90 = sphi 0, %s87
      %s91 = sphi 0, %s90
      %s107 = sphi 0, %s91
      %s113 = sphi 0, %s115
      %s116 = sphi 0, %s113
      %s117 = sphi 0, %s116
      %s133 = sphi 0, %s117
      %s139 = sphi 0, %s141
      %s142 = sphi 0, %s139
      %s143 = sphi 0, %s142
      %s159 = sphi 0, %s143
      %s165 = sphi 0, %s167
      %s168 = sphi 0, %s165
      %s169 = sphi 0, %s168
      %s185 = sphi 0, %s169
      %s191 = sphi 0, %s193
      %s194 = sphi 0, %s191
      %s195 = sphi 0, %s194
      %s211 = sphi 0, %s195
    $region4: #{tpu_custom_call.1} parent=1 // loop_header_branch
      %28 = sbr.rel (%p26) target = $region8
    $region5: #{tpu_custom_call.1} parent=1 // loop_body
      %s30 = ssub.s32 %s25, 1
      %s31 = ssub.s32 %s25, 2
      %s32 = sadd.s32 %s25, 1
      %s33 = ssub.s32 %s25, %s32
      %p34 = scmp.eq.s32.totalorder %s33, 0
      %s36 = sadd.s32 %s35, 1
      %s37 = scalar_select %p34, %s35, %s36
      %p40 = pneg %p34
      %p41 = scmp.eq.s32.totalorder %s25, 5
      %p42 = por %p40, %p41
      %p43 = scmp.ne.s32.totalorder %s35, %s38
      %p44 = scmp.eq.s32.totalorder %s25, 0
      %p45 = por %p43, %p44
      %p46 = scmp.ne.s32.totalorder %s35, %s38
      %p47 = scmp.eq.s32.totalorder %s30, 5
      %p48 = por %p46, %p47
      %p49 = scmp.ne.s32.totalorder %s38, %s39
      %p50 = scmp.eq.s32.totalorder %s30, 0
      %p51 = por %p49, %p50
      %p52 = scmp.ne.s32.totalorder %s38, %s39
      %p53 = scmp.eq.s32.totalorder %s31, 5
      %p54 = por %p52, %p53
      %p56 = scmp.ne.s32.totalorder %s39, %s55
      %p57 = scmp.eq.s32.totalorder %s31, 0
      %p58 = por %p56, %p57
      %s59 = ssub.s32 %s25, %s32
      %p60 = scmp.eq.s32.totalorder %s59, 0
      %s62 = sadd.s32 %s61, 1
      %s63 = scalar_select %p60, %s61, %s62
      %p66 = pneg %p60
      %p67 = scmp.eq.s32.totalorder %s25, 5
      %p68 = por %p66, %p67
      %p69 = scmp.ne.s32.totalorder %s61, %s64
      %p70 = scmp.eq.s32.totalorder %s25, 0
      %p71 = por %p69, %p70
      %p72 = scmp.ne.s32.totalorder %s61, %s64
      %p73 = scmp.eq.s32.totalorder %s30, 5
      %p74 = por %p72, %p73
      %p75 = scmp.ne.s32.totalorder %s64, %s65
      %p76 = scmp.eq.s32.totalorder %s30, 0
      %p77 = por %p75, %p76
      %p78 = scmp.ne.s32.totalorder %s64, %s65
      %p79 = scmp.eq.s32.totalorder %s31, 5
      %p80 = por %p78, %p79
      %p82 = scmp.ne.s32.totalorder %s65, %s81
      %p83 = scmp.eq.s32.totalorder %s31, 0
      %p84 = por %p82, %p83
      %s85 = ssub.s32 %s25, %s32
      %p86 = scmp.eq.s32.totalorder %s85, 0
      %s88 = sadd.s32 %s87, 1
      %s89 = scalar_select %p86, %s87, %s88
      %p92 = pneg %p86
      %p93 = scmp.eq.s32.totalorder %s25, 5
      %p94 = por %p92, %p93
      %p95 = scmp.ne.s32.totalorder %s87, %s90
      %p96 = scmp.eq.s32.totalorder %s25, 0
      %p97 = por %p95, %p96
      %p98 = scmp.ne.s32.totalorder %s87, %s90
      %p99 = scmp.eq.s32.totalorder %s30, 5
      %p100 = por %p98, %p99
      %p101 = scmp.ne.s32.totalorder %s90, %s91
      %p102 = scmp.eq.s32.totalorder %s30, 0
      %p103 = por %p101, %p102
      %p104 = scmp.ne.s32.totalorder %s90, %s91
      %p105 = scmp.eq.s32.totalorder %s31, 5
      %p106 = por %p104, %p105
      %p108 = scmp.ne.s32.totalorder %s91, %s107
      %p109 = scmp.eq.s32.totalorder %s31, 0
      %p110 = por %p108, %p109
      %s111 = ssub.s32 %s25, %s32
      %p112 = scmp.eq.s32.totalorder %s111, 0
      %s114 = sadd.s32 %s113, 1
      %s115 = scalar_select %p112, %s113, %s114
      %p118 = pneg %p112
      %p119 = scmp.eq.s32.totalorder %s25, 5
      %p120 = por %p118, %p119
      %p121 = scmp.ne.s32.totalorder %s113, %s116
      %p122 = scmp.eq.s32.totalorder %s25, 0
      %p123 = por %p121, %p122
      %p124 = scmp.ne.s32.totalorder %s113, %s116
      %p125 = scmp.eq.s32.totalorder %s30, 5
      %p126 = por %p124, %p125
      %p127 = scmp.ne.s32.totalorder %s116, %s117
      %p128 = scmp.eq.s32.totalorder %s30, 0
      %p129 = por %p127, %p128
      %p130 = scmp.ne.s32.totalorder %s116, %s117
      %p131 = scmp.eq.s32.totalorder %s31, 5
      %p132 = por %p130, %p131
      %p134 = scmp.ne.s32.totalorder %s117, %s133
      %p135 = scmp.eq.s32.totalorder %s31, 0
      %p136 = por %p134, %p135
      %s137 = ssub.s32 %s25, %s32
      %p138 = scmp.eq.s32.totalorder %s137, 0
      %s140 = sadd.s32 %s139, 1
      %s141 = scalar_select %p138, %s139, %s140
      %p144 = pneg %p138
      %p145 = scmp.eq.s32.totalorder %s25, 5
      %p146 = por %p144, %p145
      %p147 = scmp.ne.s32.totalorder %s139, %s142
      %p148 = scmp.eq.s32.totalorder %s25, 0
      %p149 = por %p147, %p148
      %p150 = scmp.ne.s32.totalorder %s139, %s142
      %p151 = scmp.eq.s32.totalorder %s30, 5
      %p152 = por %p150, %p151
      %p153 = scmp.ne.s32.totalorder %s142, %s143
      %p154 = scmp.eq.s32.totalorder %s30, 0
      %p155 = por %p153, %p154
      %p156 = scmp.ne.s32.totalorder %s142, %s143
      %p157 = scmp.eq.s32.totalorder %s31, 5
      %p158 = por %p156, %p157
      %p160 = scmp.ne.s32.totalorder %s143, %s159
      %p161 = scmp.eq.s32.totalorder %s31, 0
      %p162 = por %p160, %p161
      %s163 = ssub.s32 %s25, %s32
      %p164 = scmp.eq.s32.totalorder %s163, 0
      %s166 = sadd.s32 %s165, 1
      %s167 = scalar_select %p164, %s165, %s166
      %p170 = pneg %p164
      %p171 = scmp.eq.s32.totalorder %s25, 5
      %p172 = por %p170, %p171
      %p173 = scmp.ne.s32.totalorder %s165, %s168
      %p174 = scmp.eq.s32.totalorder %s25, 0
      %p175 = por %p173, %p174
      %p176 = scmp.ne.s32.totalorder %s165, %s168
      %p177 = scmp.eq.s32.totalorder %s30, 5
      %p178 = por %p176, %p177
      %p179 = scmp.ne.s32.totalorder %s168, %s169
      %p180 = scmp.eq.s32.totalorder %s30, 0
      %p181 = por %p179, %p180
      %p182 = scmp.ne.s32.totalorder %s168, %s169
      %p183 = scmp.eq.s32.totalorder %s31, 5
      %p184 = por %p182, %p183
      %p186 = scmp.ne.s32.totalorder %s169, %s185
      %p187 = scmp.eq.s32.totalorder %s31, 0
      %p188 = por %p186, %p187
      %s189 = ssub.s32 %s25, %s32
      %p190 = scmp.eq.s32.totalorder %s189, 0
      %s192 = sadd.s32 %s191, 1
      %s193 = scalar_select %p190, %s191, %s192
      %p196 = pneg %p190
      %p197 = scmp.eq.s32.totalorder %s25, 5
      %p198 = por %p196, %p197
      %p199 = scmp.ne.s32.totalorder %s191, %s194
      %p200 = scmp.eq.s32.totalorder %s25, 0
      %p201 = por %p199, %p200
      %p202 = scmp.ne.s32.totalorder %s191, %s194
      %p203 = scmp.eq.s32.totalorder %s30, 5
      %p204 = por %p202, %p203
      %p205 = scmp.ne.s32.totalorder %s194, %s195
      %p206 = scmp.eq.s32.totalorder %s30, 0
      %p207 = por %p205, %p206
      %p208 = scmp.ne.s32.totalorder %s194, %s195
      %p209 = scmp.eq.s32.totalorder %s31, 5
      %p210 = por %p208, %p209
      %p212 = scmp.ne.s32.totalorder %s195, %s211
      %p213 = scmp.eq.s32.totalorder %s31, 0
      %p214 = por %p212, %p213
      %p215 = scmp.le.s32.totalorder 1, %s25
      %p216 = scmp.lt.s32.totalorder %s25, 7
      %p217 = pnand %p215, %p216
      %p218 = pneg %p217
      // Predicated region
      $region9: #{tpu_custom_call.1} parent=5 // pred_check
        _
      $region10: #{tpu_custom_call.1} parent=5 // pred_check_branch
        %220 = sbr.rel (%p217) target = $region12
      $region11: #{tpu_custom_call.1} parent=5 // pred_region
        %s221 = ssub.s32 %s25, 1
      $region12: #{tpu_custom_call.1} parent=5 // pred_fallthru
        _
      %p222 = scmp.lt.s32.totalorder %s25, 6
      // Predicated region
      $region13: #{tpu_custom_call.1} parent=5 // pred_check
        %p223 = pneg %p222
      $region14: #{tpu_custom_call.1} parent=5 // pred_check_branch
        %225 = sbr.rel (%p223) target = $region16
      $region15: #{tpu_custom_call.1} parent=5 // pred_region
        // Predicated region
        $region17: #{tpu_custom_call.1} parent=15 // pred_check
          %p226 = pneg %p45
        $region18: #{tpu_custom_call.1} parent=15 // pred_check_branch
          %228 = sbr.rel (%p226) target = $region20
        $region19: #{tpu_custom_call.1} parent=15 // pred_region
          #allocation12 [shape = 'u32[6]{0}', space=smem, size = 0x18, scoped, tag = 'DMA stride descriptor']
          %s229 = sand.u32 %s35, 1
          %s230 = scalar_lea.sflag [#allocation3], %s229
          %s231 = sand.u32 %s35, 1
          %s232 = smul.addr %s231, 64
          %s233 = scalar_lea.vmem [#allocation2], %s232
          %s234 = smul.u32 2, %s25
          %s236 = ssub.s32 1024, 1024
          %237 = vsyncadd %s230, %s236
          %s238 = smul.addr %s234, 64
          %s239 = scalar_lea.hbm %s0, %s238
          %s241 = sshll.u32 1, 14
          %s242 = sxor.u32 4294967295, %s241
          %s244 = sld [smem:[#allocation0]]
          %s245 = sadd.s32 2, %s244
          %s247 = sshll.u32 7, 26
          %s248 = sxor.u32 4294967295, %s247
          %s249 = sand.u32 0, %s248
          %s250 = sshll.u32 %s245, 26
          %s251 = sor.u32 %s249, %s250
          %s252 = sshll.u32 %s233, 4
          %s253 = int_to_ptr.vmem [resolvable:$true] %s252
          %259 = sst [smem:[#allocation12]] 768
          %s260 = scalar_lea.smem [#allocation12], 1
          %261 = sst [smem:[%s260]] 128
          %s262 = scalar_lea.smem [#allocation12], 2
          %263 = sst [smem:[%s262]] 2
          %s264 = scalar_lea.smem [#allocation12], 3
          %265 = sst [smem:[%s264]] 64
          %s266 = scalar_lea.smem [#allocation12], 4
          %267 = sst [smem:[%s266]] 64
          %s268 = scalar_lea.smem [#allocation12], 5
          %269 = sst [smem:[%s268]] 4
          %271 = dma.general %s239, 1024, %s253, %s230, [#allocation11], [#allocation12], %s251, 0
        $region20: #{tpu_custom_call.1} parent=15 // pred_fallthru
          _
        // Predicated region
        $region21: #{tpu_custom_call.1} parent=15 // pred_check
          %p272 = pneg %p71
        $region22: #{tpu_custom_call.1} parent=15 // pred_check_branch
          %274 = sbr.rel (%p272) target = $region24
        $region23: #{tpu_custom_call.1} parent=15 // pred_region
          %s275 = sand.u32 %s25, 1
          %s276 = scalar_lea.sflag [#allocation6], %s275
          %s277 = sand.u32 %s61, 1
          %s278 = smul.addr %s277, 128
          %s279 = scalar_lea.vmem [#allocation5], %s278
          %s281 = ssub.s32 2048, 2048
          %282 = vsyncadd %s276, %s281
          %s283 = smul.addr %s25, 16
          %s284 = smul.addr %s283, 128
          %s285 = scalar_lea.hbm %s1, %s284
          %s286 = sshll.u32 %s279, 4
          %s287 = int_to_ptr.vmem [resolvable:$true] %s286
          %292 = dma.hbm_to_vmem [thread:$0]  %s285, 2048, %s287, %s276, 128, 128, 8
        $region24: #{tpu_custom_call.1} parent=15 // pred_fallthru
          _
        // Predicated region
        $region25: #{tpu_custom_call.1} parent=15 // pred_check
          %p293 = pneg %p97
        $region26: #{tpu_custom_call.1} parent=15 // pred_check_branch
          %295 = sbr.rel (%p293) target = $region28
        $region27: #{tpu_custom_call.1} parent=15 // pred_region
          %p296 = scmp.lt.s32.totalorder %s25, 5
          %s297 = scalar_select %p296, %s25, 5
          %s298 = scalar_lea.vmem %s2, %s297
        $region28: #{tpu_custom_call.1} parent=15 // pred_fallthru
          _
        // Predicated region
        $region29: #{tpu_custom_call.1} parent=15 // pred_check
          %p299 = pneg %p123
        $region30: #{tpu_custom_call.1} parent=15 // pred_check_branch
          %301 = sbr.rel (%p299) target = $region32
        $region31: #{tpu_custom_call.1} parent=15 // pred_region
          %s302 = sand.u32 %s25, 1
          %s303 = scalar_lea.sflag [#allocation6], %s302
          %s304 = sand.u32 %s113, 1
          %s305 = smul.addr %s304, 128
          %s306 = scalar_lea.vmem [#allocation7], %s305
          %s308 = ssub.s32 2048, 2048
          %309 = vsyncadd %s303, %s308
          %s310 = smul.addr %s25, 16
          %s311 = smul.addr %s310, 128
          %s312 = scalar_lea.hbm %s3, %s311
          %s313 = sshll.u32 %s306, 4
          %s314 = int_to_ptr.vmem [resolvable:$true] %s313
          %319 = dma.hbm_to_vmem [thread:$0]  %s312, 2048, %s314, %s303, 128, 128, 8
        $region32: #{tpu_custom_call.1} parent=15 // pred_fallthru
          _
        // Predicated region
        $region33: #{tpu_custom_call.1} parent=15 // pred_check
          %p320 = pneg %p149
        $region34: #{tpu_custom_call.1} parent=15 // pred_check_branch
          %322 = sbr.rel (%p320) target = $region36
        $region35: #{tpu_custom_call.1} parent=15 // pred_region
          %p323 = scmp.lt.s32.totalorder %s25, 5
          %s324 = scalar_select %p323, %s25, 5
          %s325 = scalar_lea.vmem %s4, %s324
        $region36: #{tpu_custom_call.1} parent=15 // pred_fallthru
          _
      $region16: #{tpu_custom_call.1} parent=5 // pred_fallthru
        _
      %p326 = scmp.le.s32.totalorder 1, %s25
      %p327 = scmp.lt.s32.totalorder %s25, 7
      %p328 = pnand %p326, %p327
      %p329 = pneg %p328
      // Predicated region
      $region37: #{tpu_custom_call.1} parent=5 // pred_check
        _
      $region38: #{tpu_custom_call.1} parent=5 // pred_check_branch
        %331 = sbr.rel (%p328) target = $region40
      $region39: #{tpu_custom_call.1} parent=5 // pred_region
        %s332 = ssub.s32 %s25, 1
        %s333 = sand.u32 %s38, 1
        %s334 = scalar_lea.sflag [#allocation3], %s333
        %s335 = sand.u32 %s38, 1
        %s336 = smul.addr %s335, 64
        %s337 = scalar_lea.vmem [#allocation2], %s336
        // Predicated region
        $region41: #{tpu_custom_call.1} parent=39 // pred_check
          %p338 = pneg %p51
        $region42: #{tpu_custom_call.1} parent=39 // pred_check_branch
          %340 = sbr.rel (%p338) target = $region44
        $region43: #{tpu_custom_call.1} parent=39 // pred_region
          %341 = dma.done %s334, 1024
        $region44: #{tpu_custom_call.1} parent=39 // pred_fallthru
          _
        %s342 = sand.u32 %s30, 1
        %s343 = scalar_lea.sflag [#allocation6], %s342
        %s344 = sand.u32 %s64, 1
        %s345 = smul.addr %s344, 128
        %s346 = scalar_lea.vmem [#allocation5], %s345
        // Predicated region
        $region45: #{tpu_custom_call.1} parent=39 // pred_check
          %p347 = pneg %p77
        $region46: #{tpu_custom_call.1} parent=39 // pred_check_branch
          %349 = sbr.rel (%p347) target = $region48
        $region47: #{tpu_custom_call.1} parent=39 // pred_region
          %350 = dma.done %s343, 2048
        $region48: #{tpu_custom_call.1} parent=39 // pred_fallthru
          _
        %s351 = sand.u32 %s30, 1
        %s352 = scalar_lea.sflag [#allocation6], %s351
        %s353 = sand.u32 %s116, 1
        %s354 = smul.addr %s353, 128
        %s355 = scalar_lea.vmem [#allocation7], %s354
        // Predicated region
        $region49: #{tpu_custom_call.1} parent=39 // pred_check
          %p356 = pneg %p129
        $region50: #{tpu_custom_call.1} parent=39 // pred_check_branch
          %358 = sbr.rel (%p356) target = $region52
        $region51: #{tpu_custom_call.1} parent=39 // pred_region
          %359 = dma.done %s352, 2048
        $region52: #{tpu_custom_call.1} parent=39 // pred_fallthru
          _
        %s360 = sand.u32 %s38, 1
        %s361 = scalar_lea.sflag [#allocation3], %s360
        %s362 = sand.u32 %s38, 1
        %s363 = smul.addr %s362, 64
        %s364 = scalar_lea.vmem [#allocation2], %s363
        %p365 = pneg %p51
        %p366 = pneg %p48
        %s367 = sand.u32 %s30, 1
        %s368 = scalar_lea.sflag [#allocation6], %s367
        %s369 = sand.u32 %s64, 1
        %s370 = smul.addr %s369, 128
        %s371 = scalar_lea.vmem [#allocation5], %s370
        %p372 = pneg %p77
        %p373 = pneg %p74
        %p374 = scmp.lt.s32.totalorder %s30, 5
        %s375 = scalar_select %p374, %s30, 5
        %s376 = scalar_lea.vmem %s2, %s375
        %p377 = pneg %p103
        %p378 = pneg %p100
        %s379 = sand.u32 %s30, 1
        %s380 = scalar_lea.sflag [#allocation6], %s379
        %s381 = sand.u32 %s116, 1
        %s382 = smul.addr %s381, 128
        %s383 = scalar_lea.vmem [#allocation7], %s382
        %p384 = pneg %p129
        %p385 = pneg %p126
        %p386 = scmp.lt.s32.totalorder %s30, 5
        %s387 = scalar_select %p386, %s30, 5
        %s388 = scalar_lea.vmem %s4, %s387
        %p389 = pneg %p155
        %p390 = pneg %p152
        %p391 = pneg %p181
        %p392 = pneg %p178
        %s393 = sand.u32 %s168, 1
        %s394 = scalar_lea.sflag [#allocation4], %s393
        %s395 = sand.u32 %s168, 1
        %s396 = smul.addr %s395, 4
        %s397 = scalar_lea.vmem [#allocation8], %s396
        %p398 = pneg %p207
        %p399 = pneg %p204
        %s400 = sand.u32 %s194, 1
        %s401 = scalar_lea.sflag [#allocation10], %s400
        %s402 = sand.u32 %s194, 1
        %s403 = smul.addr %s402, 8
        %s404 = scalar_lea.vmem [#allocation9], %s403
        %s405 = smul.u32 2, %s30
        %p406 = scmp.lt.s32.totalorder %s30, 5
        %s407 = scalar_select %p406, %s30, 5
        %s408 = scalar_lea.vmem %s2, %s407
        %p409 = scmp.lt.s32.totalorder %s30, 5
        %s410 = scalar_select %p409, %s30, 5
        %s411 = scalar_lea.vmem %s4, %s410
        %v412 = vld [vmem:[%s337] sm:$0xf]
        %v413 = vld [vmem:[%s337 + $0x4] sm:$0xf]
        %v414 = vld [vmem:[%s337 + $0x8] sm:$0xf]
        %v415 = vld [vmem:[%s337 + $0xc] sm:$0xf]
        %v416 = vld [vmem:[%s337 + $0x10] sm:$0xf]
        %v417 = vld [vmem:[%s337 + $0x14] sm:$0xf]
        %v418 = vld [vmem:[%s337 + $0x18] sm:$0xf]
        %v419 = vld [vmem:[%s337 + $0x1c] sm:$0xf]
        %v420 = vld [vmem:[%s337 + $0x20] sm:$0xf]
        %v421 = vld [vmem:[%s337 + $0x24] sm:$0xf]
        %v422 = vld [vmem:[%s337 + $0x28] sm:$0xf]
        %v423 = vld [vmem:[%s337 + $0x2c] sm:$0xf]
        %v424 = vld [vmem:[%s337 + $0x30] sm:$0xf]
        %v425 = vld [vmem:[%s337 + $0x34] sm:$0xf]
        %v426 = vld [vmem:[%s337 + $0x38] sm:$0xf]
        %v427 = vld [vmem:[%s337 + $0x3c] sm:$0xf]
        %v428 = vunpack.c.l.bf16 %v412
        %v429 = vunpack.c.l.bf16 %v413
        %v430 = vunpack.c.l.bf16 %v414
        %v431 = vunpack.c.l.bf16 %v415
        %v432 = vunpack.c.l.bf16 %v416
        %v433 = vunpack.c.l.bf16 %v417
        %v434 = vunpack.c.l.bf16 %v418
        %v435 = vunpack.c.l.bf16 %v419
        %v436 = vunpack.c.l.bf16 %v420
        %v437 = vunpack.c.l.bf16 %v421
        %v438 = vunpack.c.l.bf16 %v422
        %v439 = vunpack.c.l.bf16 %v423
        %v440 = vunpack.c.l.bf16 %v424
        %v441 = vunpack.c.l.bf16 %v425
        %v442 = vunpack.c.l.bf16 %v426
        %v443 = vunpack.c.l.bf16 %v427
        %v444 = vadd.f32 %v428, %v429
        %v445 = vrot.slane %v444, 4
        %v446 = vadd.f32 %v444, %v445
        %v447 = vrot.slane %v446, 2
        %v448 = vadd.f32 %v446, %v447
        %v449 = vrot.slane %v448, 1
        %v450 = vadd.f32 %v448, %v449
        %v451 = vadd.f32 %v430, %v431
        %v452 = vrot.slane %v451, 4
        %v453 = vadd.f32 %v451, %v452
        %v454 = vrot.slane %v453, 2
        %v455 = vadd.f32 %v453, %v454
        %v456 = vrot.slane %v455, 1
        %v457 = vadd.f32 %v455, %v456
        %v458 = vadd.f32 %v432, %v433
        %v459 = vrot.slane %v458, 4
        %v460 = vadd.f32 %v458, %v459
        %v461 = vrot.slane %v460, 2
        %v462 = vadd.f32 %v460, %v461
        %v463 = vrot.slane %v462, 1
        %v464 = vadd.f32 %v462, %v463
        %v465 = vadd.f32 %v434, %v435
        %v466 = vrot.slane %v465, 4
        %v467 = vadd.f32 %v465, %v466
        %v468 = vrot.slane %v467, 2
        %v469 = vadd.f32 %v467, %v468
        %v470 = vrot.slane %v469, 1
        %v471 = vadd.f32 %v469, %v470
        %v472 = vadd.f32 %v436, %v437
        %v473 = vrot.slane %v472, 4
        %v474 = vadd.f32 %v472, %v473
        %v475 = vrot.slane %v474, 2
        %v476 = vadd.f32 %v474, %v475
        %v477 = vrot.slane %v476, 1
        %v478 = vadd.f32 %v476, %v477
        %v479 = vadd.f32 %v438, %v439
        %v480 = vrot.slane %v479, 4
        %v481 = vadd.f32 %v479, %v480
        %v482 = vrot.slane %v481, 2
        %v483 = vadd.f32 %v481, %v482
        %v484 = vrot.slane %v483, 1
        %v485 = vadd.f32 %v483, %v484
        %v486 = vadd.f32 %v440, %v441
        %v487 = vrot.slane %v486, 4
        %v488 = vadd.f32 %v486, %v487
        %v489 = vrot.slane %v488, 2
        %v490 = vadd.f32 %v488, %v489
        %v491 = vrot.slane %v490, 1
        %v492 = vadd.f32 %v490, %v491
        %v493 = vadd.f32 %v442, %v443
        %v494 = vrot.slane %v493, 4
        %v495 = vadd.f32 %v493, %v494
        %v496 = vrot.slane %v495, 2
        %v497 = vadd.f32 %v495, %v496
        %v498 = vrot.slane %v497, 1
        %v499 = vadd.f32 %v497, %v498
        %v500 = vmul.f32 %v450, 0.0625
        %v501 = vmul.f32 %v457, 0.0625
        %v502 = vmul.f32 %v464, 0.0625
        %v503 = vmul.f32 %v471, 0.0625
        %v504 = vmul.f32 %v478, 0.0625
        %v505 = vmul.f32 %v485, 0.0625
        %v506 = vmul.f32 %v492, 0.0625
        %v507 = vmul.f32 %v499, 0.0625
        %v508 = vpack.c.bf16 %v500, %v500
        %v509 = vpack.c.bf16 %v501, %v501
        %v510 = vpack.c.bf16 %v502, %v502
        %v511 = vpack.c.bf16 %v503, %v503
        %v512 = vpack.c.bf16 %v504, %v504
        %v513 = vpack.c.bf16 %v505, %v505
        %v514 = vpack.c.bf16 %v506, %v506
        %v515 = vpack.c.bf16 %v507, %v507
        %v524 = vunpack.c.l.b16 %v508
        %v525 = vunpack.c.l.b16 %v509
        %v526 = vunpack.c.l.b16 %v510
        %v527 = vunpack.c.l.b16 %v511
        %v528 = vunpack.c.l.b16 %v512
        %v529 = vunpack.c.l.b16 %v513
        %v530 = vunpack.c.l.b16 %v514
        %v531 = vunpack.c.l.b16 %v515
        %v532 = vpack.c.b16 %v524, %v524
        %v533 = vpack.c.b16 %v525, %v525
        %v534 = vpack.c.b16 %v526, %v526
        %v535 = vpack.c.b16 %v527, %v527
        %v536 = vpack.c.b16 %v528, %v528
        %v537 = vpack.c.b16 %v529, %v529
        %v538 = vpack.c.b16 %v530, %v530
        %v539 = vpack.c.b16 %v531, %v531
        %v540 = vunpack.c.l.b16 %v532
        %v541 = vunpack.c.l.b16 %v533
        %v542 = vunpack.c.l.b16 %v534
        %v543 = vunpack.c.l.b16 %v535
        %v544 = vunpack.c.l.b16 %v536
        %v545 = vunpack.c.l.b16 %v537
        %v546 = vunpack.c.l.b16 %v538
        %v547 = vunpack.c.l.b16 %v539
        %vm548 = vcmask 1041409
        %v549 = vsel %vm548, %v541, %v540
        %vm550 = vcmask 1042434
        %v551 = vsel %vm550, %v542, %v549
        %vm552 = vcmask 1043459
        %v553 = vsel %vm552, %v543, %v551
        %vm554 = vcmask 1044484
        %v555 = vsel %vm554, %v544, %v553
        %vm556 = vcmask 1045509
        %v557 = vsel %vm556, %v545, %v555
        %vm558 = vcmask 1046534
        %v559 = vsel %vm558, %v546, %v557
        %vm560 = vcmask 1047559
        %v561 = vsel %vm560, %v547, %v559
        %v562 = vpack.c.b16 %v561, %v561
        %564 = vst [vmem:[%s397] sm:$0xf] %v562
        %v565 = vld [vmem:[%s346] sm:$0xff]
        %v566 = vld [vmem:[%s346 + $0x8] sm:$0xff]
        %v567 = vld [vmem:[%s346 + $0x10] sm:$0xff]
        %v568 = vld [vmem:[%s346 + $0x18] sm:$0xff]
        %v569 = vld [vmem:[%s346 + $0x20] sm:$0xff]
        %v570 = vld [vmem:[%s346 + $0x28] sm:$0xff]
        %v571 = vld [vmem:[%s346 + $0x30] sm:$0xff]
        %v572 = vld [vmem:[%s346 + $0x38] sm:$0xff]
        %v573 = vld [vmem:[%s346 + $0x40] sm:$0xff]
        %v574 = vld [vmem:[%s346 + $0x48] sm:$0xff]
        %v575 = vld [vmem:[%s346 + $0x50] sm:$0xff]
        %v576 = vld [vmem:[%s346 + $0x58] sm:$0xff]
        %v577 = vld [vmem:[%s346 + $0x60] sm:$0xff]
        %v578 = vld [vmem:[%s346 + $0x68] sm:$0xff]
        %v579 = vld [vmem:[%s346 + $0x70] sm:$0xff]
        %v580 = vld [vmem:[%s346 + $0x78] sm:$0xff]
        %v581 = vld [vmem:[%s408] sm:$0x1]
        %v583 = vlaneseq
        %v584 = vshrl.u32 %v583, 7
        %v585 = vsub.s32 0, %v584
        %v586 = vrot.slane %v581, %v585
        %v596 = vsel %vm548, %v457, %v450
        %v597 = vsel %vm550, %v464, %v596
        %v598 = vsel %vm552, %v471, %v597
        %v599 = vsel %vm554, %v478, %v598
        %v600 = vsel %vm556, %v485, %v599
        %v601 = vsel %vm558, %v492, %v600
        %v602 = vsel %vm560, %v499, %v601
        %604 = vmatprep.subr.mxu0 0.0
        %605 = vmatpush1.msra.mxu0 %v565
        %606 = vmatprep.subr.mxu0 0.0
        %607 = vmatpush1.msra.mxu0 %v566
        %608 = vmatprep.subr.mxu0 0.0
        %609 = vmatpush1.msra.mxu0 %v567
        %610 = vmatprep.subr.mxu0 0.0
        %611 = vmatpush1.msra.mxu0 %v568
        %612 = vmatprep.subr.mxu0 0.0
        %613 = vmatpush1.msra.mxu0 %v569
        %614 = vmatprep.subr.mxu0 0.0
        %615 = vmatpush1.msra.mxu0 %v570
        %616 = vmatprep.subr.mxu0 0.0
        %617 = vmatpush1.msra.mxu0 %v571
        %618 = vmatprep.subr.mxu0 0.0
        %619 = vmatpush1.msra.mxu0 %v572
        %620 = vmatprep.subr.mxu0 0.0
        %621 = vmatpush1.msra.mxu0 %v573
        %622 = vmatprep.subr.mxu0 0.0
        %623 = vmatpush1.msra.mxu0 %v574
        %624 = vmatprep.subr.mxu0 0.0
        %625 = vmatpush1.msra.mxu0 %v575
        %626 = vmatprep.subr.mxu0 0.0
        %627 = vmatpush1.msra.mxu0 %v576
        %628 = vmatprep.subr.mxu0 0.0
        %629 = vmatpush1.msra.mxu0 %v577
        %630 = vmatprep.subr.mxu0 0.0
        %631 = vmatpush1.msra.mxu0 %v578
        %632 = vmatprep.subr.mxu0 0.0
        %633 = vmatpush1.msra.mxu0 %v579
        %634 = vmatprep.subr.mxu0 0.0
        %635 = vmatpush1.msra.mxu0 %v580
        %636 = vmatprep.subr.mxu0 0.0
        %637 = vmatpush1.msra.mxu0 0.0
        %638 = vmatprep.subr.mxu0 0.0
        %639 = vmatpush1.msra.mxu0 0.0
        %640 = vmatprep.subr.mxu0 0.0
        %641 = vmatpush1.msra.mxu0 0.0
        %642 = vmatprep.subr.mxu0 0.0
        %643 = vmatpush1.msra.mxu0 0.0
        %644 = vmatprep.subr.mxu0 0.0
        %645 = vmatpush1.msra.mxu0 0.0
        %646 = vmatprep.subr.mxu0 0.0
        %647 = vmatpush1.msra.mxu0 0.0
        %648 = vmatprep.subr.mxu0 0.0
        %649 = vmatpush1.msra.mxu0 0.0
        %650 = vmatprep.subr.mxu0 0.0
        %651 = vmatpush1.msra.mxu0 0.0
        %652 = vmatprep.subr.mxu0 0.0
        %653 = vmatpush1.msra.mxu0 0.0
        %654 = vmatprep.subr.mxu0 0.0
        %655 = vmatpush1.msra.mxu0 0.0
        %656 = vmatprep.subr.mxu0 0.0
        %657 = vmatpush1.msra.mxu0 0.0
        %658 = vmatprep.subr.mxu0 0.0
        %659 = vmatpush1.msra.mxu0 0.0
        %660 = vmatprep.subr.mxu0 0.0
        %661 = vmatpush1.msra.mxu0 0.0
        %662 = vmatprep.subr.mxu0 0.0
        %663 = vmatpush1.msra.mxu0 0.0
        %664 = vmatprep.subr.mxu0 0.0
        %665 = vmatpush1.msra.mxu0 0.0
        %666 = vmatprep.subr.mxu0 0.0
        %667 = vmatpush1.msra.mxu0 0.0
        %668 = vmatprep.mubr.f32.mxu0 0.0
        %669 = vmatmul.mubr.f32.gmra.mrb[0].mxu0 %v602
        %v670 = vpop.f32.mrb[0].mxu0
        %v671 = vadd.f32 %v586, %v670
        %v672 = vpop.f32.mrb[0].mxu0
        %673 = vdwg.mxu0
        %v674 = vmax.f32 %v671, 0.0
        %v675 = vld [vmem:[%s355] sm:$0xff]
        %v676 = vld [vmem:[%s355 + $0x8] sm:$0xff]
        %v677 = vld [vmem:[%s355 + $0x10] sm:$0xff]
        %v678 = vld [vmem:[%s355 + $0x18] sm:$0xff]
        %v679 = vld [vmem:[%s355 + $0x20] sm:$0xff]
        %v680 = vld [vmem:[%s355 + $0x28] sm:$0xff]
        %v681 = vld [vmem:[%s355 + $0x30] sm:$0xff]
        %v682 = vld [vmem:[%s355 + $0x38] sm:$0xff]
        %v683 = vld [vmem:[%s355 + $0x40] sm:$0xff]
        %v684 = vld [vmem:[%s355 + $0x48] sm:$0xff]
        %v685 = vld [vmem:[%s355 + $0x50] sm:$0xff]
        %v686 = vld [vmem:[%s355 + $0x58] sm:$0xff]
        %v687 = vld [vmem:[%s355 + $0x60] sm:$0xff]
        %v688 = vld [vmem:[%s355 + $0x68] sm:$0xff]
        %v689 = vld [vmem:[%s355 + $0x70] sm:$0xff]
        %v690 = vld [vmem:[%s355 + $0x78] sm:$0xff]
        %v691 = vld [vmem:[%s411] sm:$0x1]
        %v693 = vlaneseq
        %v694 = vshrl.u32 %v693, 7
        %v695 = vsub.s32 0, %v694
        %v696 = vrot.slane %v691, %v695
        %698 = vmatprep.subr.mxu0 0.0
        %699 = vmatpush1.msra.mxu0 %v675
        %700 = vmatprep.subr.mxu0 0.0
        %701 = vmatpush1.msra.mxu0 %v676
        %702 = vmatprep.subr.mxu0 0.0
        %703 = vmatpush1.msra.mxu0 %v677
        %704 = vmatprep.subr.mxu0 0.0
        %705 = vmatpush1.msra.mxu0 %v678
        %706 = vmatprep.subr.mxu0 0.0
        %707 = vmatpush1.msra.mxu0 %v679
        %708 = vmatprep.subr.mxu0 0.0
        %709 = vmatpush1.msra.mxu0 %v680
        %710 = vmatprep.subr.mxu0 0.0
        %711 = vmatpush1.msra.mxu0 %v681
        %712 = vmatprep.subr.mxu0 0.0
        %713 = vmatpush1.msra.mxu0 %v682
        %714 = vmatprep.subr.mxu0 0.0
        %715 = vmatpush1.msra.mxu0 %v683
        %716 = vmatprep.subr.mxu0 0.0
        %717 = vmatpush1.msra.mxu0 %v684
        %718 = vmatprep.subr.mxu0 0.0
        %719 = vmatpush1.msra.mxu0 %v685
        %720 = vmatprep.subr.mxu0 0.0
        %721 = vmatpush1.msra.mxu0 %v686
        %722 = vmatprep.subr.mxu0 0.0
        %723 = vmatpush1.msra.mxu0 %v687
        %724 = vmatprep.subr.mxu0 0.0
        %725 = vmatpush1.msra.mxu0 %v688
        %726 = vmatprep.subr.mxu0 0.0
        %727 = vmatpush1.msra.mxu0 %v689
        %728 = vmatprep.subr.mxu0 0.0
        %729 = vmatpush1.msra.mxu0 %v690
        %730 = vmatprep.subr.mxu0 0.0
        %731 = vmatpush1.msra.mxu0 0.0
        %732 = vmatprep.subr.mxu0 0.0
        %733 = vmatpush1.msra.mxu0 0.0
        %734 = vmatprep.subr.mxu0 0.0
        %735 = vmatpush1.msra.mxu0 0.0
        %736 = vmatprep.subr.mxu0 0.0
        %737 = vmatpush1.msra.mxu0 0.0
        %738 = vmatprep.subr.mxu0 0.0
        %739 = vmatpush1.msra.mxu0 0.0
        %740 = vmatprep.subr.mxu0 0.0
        %741 = vmatpush1.msra.mxu0 0.0
        %742 = vmatprep.subr.mxu0 0.0
        %743 = vmatpush1.msra.mxu0 0.0
        %744 = vmatprep.subr.mxu0 0.0
        %745 = vmatpush1.msra.mxu0 0.0
        %746 = vmatprep.subr.mxu0 0.0
        %747 = vmatpush1.msra.mxu0 0.0
        %748 = vmatprep.subr.mxu0 0.0
        %749 = vmatpush1.msra.mxu0 0.0
        %750 = vmatprep.subr.mxu0 0.0
        %751 = vmatpush1.msra.mxu0 0.0
        %752 = vmatprep.subr.mxu0 0.0
        %753 = vmatpush1.msra.mxu0 0.0
        %754 = vmatprep.subr.mxu0 0.0
        %755 = vmatpush1.msra.mxu0 0.0
        %756 = vmatprep.subr.mxu0 0.0
        %757 = vmatpush1.msra.mxu0 0.0
        %758 = vmatprep.subr.mxu0 0.0
        %759 = vmatpush1.msra.mxu0 0.0
        %760 = vmatprep.subr.mxu0 0.0
        %761 = vmatpush1.msra.mxu0 0.0
        %762 = vmatprep.mubr.f32.mxu0 0.0
        %763 = vmatmul.mubr.f32.gmra.mrb[0].mxu0 %v674
        %v764 = vpop.f32.mrb[0].mxu0
        %v765 = vadd.f32 %v696, %v764
        %v766 = vpop.f32.mrb[0].mxu0
        %767 = vdwg.mxu0
        %768 = vst [vmem:[%s404] sm:$0xff] %v765
        %s769 = sand.u32 %s168, 1
        %s770 = scalar_lea.sflag [#allocation4], %s769
        %s771 = sand.u32 %s168, 1
        %s772 = smul.addr %s771, 4
        %s773 = scalar_lea.vmem [#allocation8], %s772
        %s774 = sand.u32 %s194, 1
        %s775 = scalar_lea.sflag [#allocation10], %s774
        %s776 = sand.u32 %s194, 1
        %s777 = smul.addr %s776, 8
        %s778 = scalar_lea.vmem [#allocation9], %s777
        // Predicated region
        $region53: #{tpu_custom_call.1} parent=39 // pred_check
          %p779 = pneg %p178
        $region54: #{tpu_custom_call.1} parent=39 // pred_check_branch
          %781 = sbr.rel (%p779) target = $region56
        $region55: #{tpu_custom_call.1} parent=39 // pred_region
          %s783 = ssub.s32 64, 64
          %784 = vsyncadd %s770, %s783
          %s785 = smul.addr %s30, 64
          %s786 = scalar_lea.hbm %s5, %s785
          %s788 = sshll.u32 %s773, 4
          %s789 = int_to_ptr.vmem [resolvable:$true] %s788
          %791 = dma.vmem_to_hbm [thread:$0]  %s789, 64, %s786, %s770
        $region56: #{tpu_custom_call.1} parent=39 // pred_fallthru
          _
        // Predicated region
        $region57: #{tpu_custom_call.1} parent=39 // pred_check
          %p792 = pneg %p204
        $region58: #{tpu_custom_call.1} parent=39 // pred_check_branch
          %794 = sbr.rel (%p792) target = $region60
        $region59: #{tpu_custom_call.1} parent=39 // pred_region
          %s796 = ssub.s32 128, 128
          %797 = vsyncadd %s775, %s796
          %s798 = smul.addr %s30, 128
          %s799 = scalar_lea.hbm %s6, %s798
          %s801 = sshll.u32 %s778, 4
          %s802 = int_to_ptr.vmem [resolvable:$true] %s801
          %804 = dma.vmem_to_hbm [thread:$0]  %s802, 128, %s799, %s775
        $region60: #{tpu_custom_call.1} parent=39 // pred_fallthru
          _
      $region40: #{tpu_custom_call.1} parent=5 // pred_fallthru
        _
      %p805 = scmp.le.s32.totalorder 2, %s25
      // Predicated region
      $region61: #{tpu_custom_call.1} parent=5 // pred_check
        %p806 = pneg %p805
      $region62: #{tpu_custom_call.1} parent=5 // pred_check_branch
        %808 = sbr.rel (%p806) target = $region64
      $region63: #{tpu_custom_call.1} parent=5 // pred_region
        %s809 = ssub.s32 %s25, 2
        // Predicated region
        $region65: #{tpu_custom_call.1} parent=63 // pred_check
          %p810 = pneg %p184
        $region66: #{tpu_custom_call.1} parent=63 // pred_check_branch
          %812 = sbr.rel (%p810) target = $region68
        $region67: #{tpu_custom_call.1} parent=63 // pred_region
          %s813 = sand.u32 %s169, 1
          %s814 = scalar_lea.sflag [#allocation4], %s813
          %s815 = sand.u32 %s169, 1
          %s816 = smul.addr %s815, 4
          %s817 = scalar_lea.vmem [#allocation8], %s816
          %818 = dma.done %s814, 64
        $region68: #{tpu_custom_call.1} parent=63 // pred_fallthru
          _
        // Predicated region
        $region69: #{tpu_custom_call.1} parent=63 // pred_check
          %p819 = pneg %p210
        $region70: #{tpu_custom_call.1} parent=63 // pred_check_branch
          %821 = sbr.rel (%p819) target = $region72
        $region71: #{tpu_custom_call.1} parent=63 // pred_region
          %s822 = sand.u32 %s195, 1
          %s823 = scalar_lea.sflag [#allocation10], %s822
          %s824 = sand.u32 %s195, 1
          %s825 = smul.addr %s824, 8
          %s826 = scalar_lea.vmem [#allocation9], %s825
          %827 = dma.done %s823, 128
        $region72: #{tpu_custom_call.1} parent=63 // pred_fallthru
          _
      $region64: #{tpu_custom_call.1} parent=5 // pred_fallthru
        _
    $region6: #{tpu_custom_call.1} parent=1 // loop_footer
      %s29 = sadd.s32 1, %s25
    $region7: #{tpu_custom_call.1} parent=1 // loop_footer_branch
      %24 = sbr.rel target = $region3
    $region8: #{tpu_custom_call.1} parent=1 // loop_exit
      _
    %828 = vsyncpa [#allocation3], 1
    %s829 = scalar_lea.sflag [#allocation3], 1
    %830 = vsyncpa %s829, 1
    %831 = vsyncpa [#allocation6], 1
    %s832 = scalar_lea.sflag [#allocation6], 1
    %833 = vsyncpa %s832, 1
    %834 = vsyncpa [#allocation4], 1
    %s835 = scalar_lea.sflag [#allocation4], 1
    %836 = vsyncpa %s835, 1
    %837 = vsyncpa [#allocation10], 1
    %s838 = scalar_lea.sflag [#allocation10], 1
    %839 = vsyncpa %s838, 1

</llo_original>
